<compile_context>
chip_gen: v6e
topology: v6e:2x2x1
jax: 0.10.0
libtpu: 0.0.40
codegen_flags: <defaults>
</compile_context>

<pallas_src>
import jax
import jax.numpy as jnp
from jax import lax
from jax.experimental import pallas as pl
from jax.experimental.pallas import tpu as pltpu


def _round_up(x, m):
    return ((x + m - 1) // m) * m


def _make_decoder_kernel(activations, out_chunk):
    """Build a kernel for refs = (x, W1, b1, W2, b2, ..., out).

    W_i refs are (in_f, out_f); b_i refs are (1, out_f).
    """
    n_layers = len(activations)

    def apply_act(h, act):
        if act == "sigmoid":
            # exact form (exp runs on the EUP slot); kept exact so numerics
            # match the reference bit-for-bit in f32.
            return 1.0 / (1.0 + jnp.exp(-h))
        if act == "relu":
            return jnp.maximum(h, 0.0)
        return h  # "none"

    def kernel(*refs):
        x_ref = refs[0]
        o_ref = refs[-1]

        h = x_ref[...]  # (TB, in_f) — keep source dtype, cast to weight dtype per dot

        # Hidden layers (all but the last): activations are small, keep resident.
        for l in range(n_layers - 1):
            w = refs[1 + 2 * l][...]                 # (in_f, out_f)
            b = refs[2 + 2 * l][...]                 # (1, out_f)
            hh = lax.dot_general(
                h.astype(w.dtype), w,
                dimension_numbers=(((1,), (0,)), ((), ())),
                preferred_element_type=jnp.float32,
            ) + b.astype(jnp.float32)
            h = apply_act(hh, activations[l])

        # Final layer: chunk over output features so the (TB, F) f32 result is
        # never fully live; bias + activation + cast + store fuse per chunk and
        # stores overlap the remaining MXU work.
        w_ref = refs[1 + 2 * (n_layers - 1)]         # (in_f, F)
        b_ref = refs[2 + 2 * (n_layers - 1)]         # (1, F)
        F = o_ref.shape[1]
        h_in = h.astype(w_ref.dtype)
        last_act = activations[-1]
        for c0 in range(0, F, out_chunk):
            c1 = min(c0 + out_chunk, F)
            hc = lax.dot_general(
                h_in, w_ref[:, c0:c1],
                dimension_numbers=(((1,), (0,)), ((), ())),
                preferred_element_type=jnp.float32,
            ) + b_ref[:, c0:c1].astype(jnp.float32)
            hc = apply_act(hc, last_act)
            o_ref[:, c0:c1] = hc.astype(o_ref.dtype)

    return kernel


def decoder_forward(x, params, activations, *, max_batch_tile=512, out_chunk=256):
    """Fused Decoder forward.

    x: (B, latent_dims)
    params: [(W_i, b_i)] with W_i in PyTorch (out_f, in_f) layout, b_i (out_f,).
    activations: list of "sigmoid" | "relu" | "none", one per layer.
    """
    B, L = x.shape
    n_layers = len(params)
    assert len(activations) == n_layers
    F = params[-1][0].shape[0]

    # One-time layout fix: (out_f, in_f) -> (in_f, out_f), bias -> (1, out_f).
    # Constant-folded for static params; gives the kernel a native MXU feed.
    params_t = [(jnp.transpose(w), b.reshape(1, -1)) for (w, b) in params]

    # ---- batch tile selection ----------------------------------------------
    if B <= 8:
        TB = B
    else:
        TB = min(max_batch_tile, B)
        if B >= 128:
            # v7x megacore: ensure the "parallel" batch axis has >= 2 grid
            # steps so both TensorCores get work.
            TB = min(TB, _round_up(pl.cdiv(B, 2), 8))
        if TB != B:
            TB = _round_up(TB, 8)  # sublane-aligned tiles when not full batch

    # ---- VMEM budget guard (weights are pinned resident) --------------------
    itemsize_x = jnp.dtype(x.dtype).itemsize
    max_hidden = max([w.shape[1] for (w, _) in params_t[:-1]] + [L])

    def _vmem_bytes(tb):
        w_bytes = 0
        for w, b in params_t:
            w_bytes += (w.size + b.size) * jnp.dtype(w.dtype).itemsize
        w_bytes *= 2                                   # conservative: 2 buffers
        io = 2 * tb * L * itemsize_x + 2 * tb * F * itemsize_x
        live = tb * max_hidden * 4 + tb * min(out_chunk, F) * 4
        return w_bytes + io + live

    VMEM_BUDGET = 24 * 1024 * 1024                     # fits all gens (v7x: 64 MiB phys)
    while TB > 8 and _vmem_bytes(TB) > VMEM_BUDGET:
        TB = max(8, _round_up(TB // 2, 8))
    vmem_limit = int(min(48 * 1024 * 1024,
                         max(16 * 1024 * 1024, 2 * _vmem_bytes(TB))))

    grid = (pl.cdiv(B, TB),)

    # ---- specs / args / cost -------------------------------------------------
    in_specs = [pl.BlockSpec((TB, L), lambda i: (i, 0))]
    flat_args = [x]

    flops = 0
    transcendentals = 0
    bytes_accessed = (B * L + B * F) * itemsize_x
    in_f = L
    for (w, b), act in zip(params_t, activations):
        w_in, out_f = w.shape
        assert w_in == in_f, "layer feature mismatch"
        # Weights/biases: full blocks, pinned resident across all batch tiles.
        in_specs.append(pl.BlockSpec((in_f, out_f), lambda i: (0, 0)))
        in_specs.append(pl.BlockSpec((1, out_f), lambda i: (0, 0)))
        flat_args.append(w)
        flat_args.append(b)
        flops += 2 * B * in_f * out_f + B * out_f
        if act == "sigmoid":
            transcendentals += B * out_f
        bytes_accessed += (out_f * in_f + out_f) * jnp.dtype(w.dtype).itemsize
        in_f = out_f

    out_specs = pl.BlockSpec((TB, F), lambda i: (i, 0))

    return pl.pallas_call(
        _make_decoder_kernel(tuple(activations), out_chunk),
        out_shape=jax.ShapeDtypeStruct((B, F), x.dtype),
        grid=grid,
        in_specs=in_specs,
        out_specs=out_specs,
        compiler_params=pltpu.CompilerParams(
            dimension_semantics=("parallel",),
            vmem_limit_bytes=vmem_limit),
        cost_estimate=pl.CostEstimate(
            flops=flops,
            transcendentals=transcendentals,
            bytes_accessed=bytes_accessed),
    )(*flat_args)


if __name__ == "__main__":
    # Decoder(latent_dims=8, feature_size=784, layer_sizes=[128], norm_output=False)
    batch = 64
    latent_dims = 8
    feature_size = 784
    layer_sizes = [128]
    norm_output = False

    key = jax.random.PRNGKey(0)
    kx, key = jax.random.split(key)
    x = jax.random.normal(kx, (batch, latent_dims), dtype=jnp.float32)

    # Linear layer dims exactly as the PyTorch module builds them.
    dims = [latent_dims] + list(layer_sizes) + [feature_size]
    params = []
    for l in range(len(dims) - 1):
        in_f, out_f = dims[l], dims[l + 1]
        kw, kb, key = jax.random.split(key, 3)
        bound = 1.0 / (in_f ** 0.5)  # PyTorch nn.Linear-style uniform init
        w = jax.random.uniform(kw, (out_f, in_f), minval=-bound, maxval=bound,
                               dtype=jnp.float32)
        b = jax.random.uniform(kb, (out_f,), minval=-bound, maxval=bound,
                               dtype=jnp.float32)
        params.append((w, b))

    activations = (["sigmoid"]
                   + ["relu"] * (len(layer_sizes) - 1)
                   + (["sigmoid"] if norm_output else ["none"]))

    out = decoder_forward(x, params, activations)
    out = jax.block_until_ready(out)

    # Plain-JAX reference of the PyTorch forward semantics.
    h = x
    for (w, b), act in zip(params, activations):
        h = h @ w.T + b
        if act == "sigmoid":
            h = 1.0 / (1.0 + jnp.exp(-h))
        elif act == "relu":
            h = jnp.maximum(h, 0.0)

    assert out.shape == (batch, feature_size)
    assert jnp.allclose(out, h, atol=1e-5, rtol=1e-5), "mismatch vs reference"

    print("KERNEL_OK")
</pallas_src>

<mosaic_0001>
module attributes {stable_mosaic.version = 11 : i64} {
  func.func @kernel(%arg0: i32, %arg1: memref<64x8xf32, #tpu.memory_space<vmem>>, %arg2: memref<8x128xf32, #tpu.memory_space<vmem>>, %arg3: memref<1x128xf32, #tpu.memory_space<vmem>>, %arg4: memref<128x784xf32, #tpu.memory_space<vmem>>, %arg5: memref<1x784xf32, #tpu.memory_space<vmem>>, %arg6: memref<64x784xf32, #tpu.memory_space<vmem>>) attributes {dimension_semantics = [#tpu.dimension_semantics<parallel>], iteration_bounds = array<i64: 1>, scalar_prefetch = 0 : i64, scratch_operands = 0 : i64, tpu.core_type = #tpu.core_type<tc>, window_params = [{transform_indices = @transform_0, window_bounds = array<i64: 64, 8>}, {pipeline_mode = #tpu.pipeline_mode<synchronous>, transform_indices = @transform_1, window_bounds = array<i64: 8, 128>}, {pipeline_mode = #tpu.pipeline_mode<synchronous>, transform_indices = @transform_2, window_bounds = array<i64: 1, 128>}, {pipeline_mode = #tpu.pipeline_mode<synchronous>, transform_indices = @transform_3, window_bounds = array<i64: 128, 784>}, {pipeline_mode = #tpu.pipeline_mode<synchronous>, transform_indices = @transform_4, window_bounds = array<i64: 1, 784>}, {transform_indices = @transform_5, window_bounds = array<i64: 64, 784>}]} {
    %c0 = arith.constant 0 : index
    %c0_0 = arith.constant 0 : index
    %0 = vector.load %arg1[%c0, %c0_0] : memref<64x8xf32, #tpu.memory_space<vmem>>, vector<64x8xf32>
    %c0_1 = arith.constant 0 : index
    %c0_2 = arith.constant 0 : index
    %1 = vector.load %arg2[%c0_1, %c0_2] : memref<8x128xf32, #tpu.memory_space<vmem>>, vector<8x128xf32>
    %c0_3 = arith.constant 0 : index
    %c0_4 = arith.constant 0 : index
    %2 = vector.load %arg3[%c0_3, %c0_4] : memref<1x128xf32, #tpu.memory_space<vmem>>, vector<1x128xf32>
    %cst = arith.constant dense<0.000000e+00> : vector<64x128xf32>
    %3 = tpu.matmul %0, %1, %cst {dimension_numbers = #tpu.dot_dimension_numbers<[1], [0], [0], [1], [0, 0, 1, 1], [], []>} : vector<64x8xf32>, vector<8x128xf32>, vector<64x128xf32> -> vector<64x128xf32>
    %4 = vector.broadcast %2 : vector<1x128xf32> to vector<64x128xf32>
    %5 = arith.addf %3, %4 : vector<64x128xf32>
    %cst_5 = arith.constant 0.000000e+00 : f32
    %6 = vector.broadcast %cst_5 : f32 to vector<64x128xf32>
    %7 = arith.subf %6, %5 : vector<64x128xf32>
    %8 = math.exp %7 : vector<64x128xf32>
    %cst_6 = arith.constant 1.000000e+00 : f32
    %9 = vector.broadcast %cst_6 : f32 to vector<64x128xf32>
    %10 = arith.addf %9, %8 : vector<64x128xf32>
    %cst_7 = arith.constant 1.000000e+00 : f32
    %11 = vector.broadcast %cst_7 : f32 to vector<64x128xf32>
    %12 = arith.divf %11, %10 : vector<64x128xf32>
    %c0_8 = arith.constant 0 : index
    %c0_9 = arith.constant 0 : index
    %13 = vector.load %arg4[%c0_8, %c0_9] : memref<128x784xf32, #tpu.memory_space<vmem>>, vector<128x256xf32>
    %cst_10 = arith.constant dense<0.000000e+00> : vector<64x256xf32>
    %14 = tpu.matmul %12, %13, %cst_10 {dimension_numbers = #tpu.dot_dimension_numbers<[1], [0], [0], [1], [0, 0, 1, 1], [], []>} : vector<64x128xf32>, vector<128x256xf32>, vector<64x256xf32> -> vector<64x256xf32>
    %c0_11 = arith.constant 0 : index
    %c0_12 = arith.constant 0 : index
    %15 = vector.load %arg5[%c0_11, %c0_12] : memref<1x784xf32, #tpu.memory_space<vmem>>, vector<1x256xf32>
    %16 = vector.broadcast %15 : vector<1x256xf32> to vector<64x256xf32>
    %17 = arith.addf %14, %16 : vector<64x256xf32>
    %c0_13 = arith.constant 0 : index
    %c0_14 = arith.constant 0 : index
    %18 = vector.load %arg6[%c0_13, %c0_14] : memref<64x784xf32, #tpu.memory_space<vmem>>, vector<64x256xf32>
    tpu.vector_store %arg6[%c0_13, %c0_14], %17 {strides = array<i32>} : memref<64x784xf32, #tpu.memory_space<vmem>>, vector<64x256xf32>,
    %c0_15 = arith.constant 0 : index
    %c256 = arith.constant 256 : index
    %19 = vector.load %arg4[%c0_15, %c256] : memref<128x784xf32, #tpu.memory_space<vmem>>, vector<128x256xf32>
    %cst_16 = arith.constant dense<0.000000e+00> : vector<64x256xf32>
    %20 = tpu.matmul %12, %19, %cst_16 {dimension_numbers = #tpu.dot_dimension_numbers<[1], [0], [0], [1], [0, 0, 1, 1], [], []>} : vector<64x128xf32>, vector<128x256xf32>, vector<64x256xf32> -> vector<64x256xf32>
    %c0_17 = arith.constant 0 : index
    %c256_18 = arith.constant 256 : index
    %21 = vector.load %arg5[%c0_17, %c256_18] : memref<1x784xf32, #tpu.memory_space<vmem>>, vector<1x256xf32>
    %22 = vector.broadcast %21 : vector<1x256xf32> to vector<64x256xf32>
    %23 = arith.addf %20, %22 : vector<64x256xf32>
    %c0_19 = arith.constant 0 : index
    %c256_20 = arith.constant 256 : index
    %24 = vector.load %arg6[%c0_19, %c256_20] : memref<64x784xf32, #tpu.memory_space<vmem>>, vector<64x256xf32>
    tpu.vector_store %arg6[%c0_19, %c256_20], %23 {strides = array<i32>} : memref<64x784xf32, #tpu.memory_space<vmem>>, vector<64x256xf32>,
    %c0_21 = arith.constant 0 : index
    %c512 = arith.constant 512 : index
    %25 = vector.load %arg4[%c0_21, %c512] : memref<128x784xf32, #tpu.memory_space<vmem>>, vector<128x256xf32>
    %cst_22 = arith.constant dense<0.000000e+00> : vector<64x256xf32>
    %26 = tpu.matmul %12, %25, %cst_22 {dimension_numbers = #tpu.dot_dimension_numbers<[1], [0], [0], [1], [0, 0, 1, 1], [], []>} : vector<64x128xf32>, vector<128x256xf32>, vector<64x256xf32> -> vector<64x256xf32>
    %c0_23 = arith.constant 0 : index
    %c512_24 = arith.constant 512 : index
    %27 = vector.load %arg5[%c0_23, %c512_24] : memref<1x784xf32, #tpu.memory_space<vmem>>, vector<1x256xf32>
    %28 = vector.broadcast %27 : vector<1x256xf32> to vector<64x256xf32>
    %29 = arith.addf %26, %28 : vector<64x256xf32>
    %c0_25 = arith.constant 0 : index
    %c512_26 = arith.constant 512 : index
    %30 = vector.load %arg6[%c0_25, %c512_26] : memref<64x784xf32, #tpu.memory_space<vmem>>, vector<64x256xf32>
    tpu.vector_store %arg6[%c0_25, %c512_26], %29 {strides = array<i32>} : memref<64x784xf32, #tpu.memory_space<vmem>>, vector<64x256xf32>,
    %c0_27 = arith.constant 0 : index
    %c768 = arith.constant 768 : index
    %31 = vector.load %arg4[%c0_27, %c768] : memref<128x784xf32, #tpu.memory_space<vmem>>, vector<128x16xf32>
    %cst_28 = arith.constant dense<0.000000e+00> : vector<64x16xf32>
    %32 = tpu.matmul %12, %31, %cst_28 {dimension_numbers = #tpu.dot_dimension_numbers<[1], [0], [0], [1], [0, 0, 1, 1], [], []>} : vector<64x128xf32>, vector<128x16xf32>, vector<64x16xf32> -> vector<64x16xf32>
    %c0_29 = arith.constant 0 : index
    %c768_30 = arith.constant 768 : index
    %33 = vector.load %arg5[%c0_29, %c768_30] : memref<1x784xf32, #tpu.memory_space<vmem>>, vector<1x16xf32>
    %34 = vector.broadcast %33 : vector<1x16xf32> to vector<64x16xf32>
    %35 = arith.addf %32, %34 : vector<64x16xf32>
    %c0_31 = arith.constant 0 : index
    %c768_32 = arith.constant 768 : index
    %36 = vector.load %arg6[%c0_31, %c768_32] : memref<64x784xf32, #tpu.memory_space<vmem>>, vector<64x16xf32>
    tpu.vector_store %arg6[%c0_31, %c768_32], %35 {strides = array<i32>} : memref<64x784xf32, #tpu.memory_space<vmem>>, vector<64x16xf32>,
    return
  }
  func.func @transform_0(%arg0: i32) -> (i32, i32) {
    %c0_i32 = arith.constant 0 : i32
    %c0_i32_0 = arith.constant 0 : i32
    return %arg0, %c0_i32 : i32, i32
  }
  func.func @transform_1(%arg0: i32) -> (i32, i32) {
    %c0_i32 = arith.constant 0 : i32
    %c0_i32_0 = arith.constant 0 : i32
    %c0_i32_1 = arith.constant 0 : i32
    return %c0_i32, %c0_i32_0 : i32, i32
  }
  func.func @transform_2(%arg0: i32) -> (i32, i32) {
    %c0_i32 = arith.constant 0 : i32
    %c0_i32_0 = arith.constant 0 : i32
    %c0_i32_1 = arith.constant 0 : i32
    return %c0_i32, %c0_i32_0 : i32, i32
  }
  func.func @transform_3(%arg0: i32) -> (i32, i32) {
    %c0_i32 = arith.constant 0 : i32
    %c0_i32_0 = arith.constant 0 : i32
    %c0_i32_1 = arith.constant 0 : i32
    return %c0_i32, %c0_i32_0 : i32, i32
  }
  func.func @transform_4(%arg0: i32) -> (i32, i32) {
    %c0_i32 = arith.constant 0 : i32
    %c0_i32_0 = arith.constant 0 : i32
    %c0_i32_1 = arith.constant 0 : i32
    return %c0_i32, %c0_i32_0 : i32, i32
  }
  func.func @transform_5(%arg0: i32) -> (i32, i32) {
    %c0_i32 = arith.constant 0 : i32
    %c0_i32_0 = arith.constant 0 : i32
    return %arg0, %c0_i32 : i32, i32
  }
}

</mosaic_0001>

<llo_original>
// kernel: tpu_custom_call.1
$region0: #{tpu_custom_call.1}
  #allocation0 [shape = 'u32[]', space=smem, size = 0x4, offset = 0x4, fixed_abs, tag = 'smem constant byte address 0x4 - core index']
  #allocation1 [shape = 'u32[144,128]{1,0:T(1,128)}', space=vmem, size = 0x12000, scoped, tag = 'internal scratch']
  %s0 = inlined_call_operand.vmem [shape: f32[64,8], index: 0, kind: input, shape index: {}]
  %s1 = inlined_call_operand.vmem [shape: f32[8,128], index: 1, kind: input, shape index: {}]
  %s2 = inlined_call_operand.vmem [shape: f32[1,128], index: 2, kind: input, shape index: {}]
  %s3 = inlined_call_operand.vmem [shape: f32[128,784], index: 3, kind: input, shape index: {}]
  %s4 = inlined_call_operand.vmem [shape: f32[1,784], index: 4, kind: input, shape index: {}]
  %s5 = inlined_call_operand.hbm [shape: f32[64,784], index: 5, kind: output, shape index: {}]
  %s6 = sld [smem:[#allocation0]]
  $region30: #{tpu_custom_call.1} parent=0
    _
  %s8 = ssub.s32 1, %s6
  %s9 = scalar_select 0, %s8, %s6
  $region1: #{tpu_custom_call.1} parent=0
    #allocation2 [shape = 'u8[229376]{0}', space=vmem, size = 0x38000, scoped, tag = 'output window, operand 0, single buffered']
    #allocation3 [shape = 's32[1]{0}', space=sflag, size = 0x4, scoped, tag = 'scoped memory for tpu_custom_call.1']
    %10 = vsyncpa [#allocation3], 0
    // Predicated region
    $region2: #{tpu_custom_call.1} parent=1 // pred_check
      _
    $region3: #{tpu_custom_call.1} parent=1 // pred_check_branch
      %12 = sbr.rel (0) target = $region5
    $region4: #{tpu_custom_call.1} parent=1 // pred_region
      _
    $region5: #{tpu_custom_call.1} parent=1 // pred_fallthru
      _
    // Predicated region
    $region6: #{tpu_custom_call.1} parent=1 // pred_check
      _
    $region7: #{tpu_custom_call.1} parent=1 // pred_check_branch
      %14 = sbr.rel (0) target = $region9
    $region8: #{tpu_custom_call.1} parent=1 // pred_region
      _
    $region9: #{tpu_custom_call.1} parent=1 // pred_fallthru
      _
    // Predicated region
    $region10: #{tpu_custom_call.1} parent=1 // pred_check
      _
    $region11: #{tpu_custom_call.1} parent=1 // pred_check_branch
      %16 = sbr.rel (0) target = $region13
    $region12: #{tpu_custom_call.1} parent=1 // pred_region
      _
    $region13: #{tpu_custom_call.1} parent=1 // pred_fallthru
      _
    // Predicated region
    $region14: #{tpu_custom_call.1} parent=1 // pred_check
      _
    $region15: #{tpu_custom_call.1} parent=1 // pred_check_branch
      %18 = sbr.rel (0) target = $region17
    $region16: #{tpu_custom_call.1} parent=1 // pred_region
      _
    $region17: #{tpu_custom_call.1} parent=1 // pred_fallthru
      _
    // Predicated region
    $region18: #{tpu_custom_call.1} parent=1 // pred_check
      _
    $region19: #{tpu_custom_call.1} parent=1 // pred_check_branch
      %20 = sbr.rel (0) target = $region21
    $region20: #{tpu_custom_call.1} parent=1 // pred_region
      _
    $region21: #{tpu_custom_call.1} parent=1 // pred_fallthru
      _
    %v21 = vld [vmem:[%s0] sm:$0xff]
    %v22 = vld [vmem:[%s0 + $0x8] sm:$0xff]
    %v23 = vld [vmem:[%s0 + $0x10] sm:$0xff]
    %v24 = vld [vmem:[%s0 + $0x18] sm:$0xff]
    %v25 = vld [vmem:[%s0 + $0x20] sm:$0xff]
    %v26 = vld [vmem:[%s0 + $0x28] sm:$0xff]
    %v27 = vld [vmem:[%s0 + $0x30] sm:$0xff]
    %v28 = vld [vmem:[%s0 + $0x38] sm:$0xff]
    %v29 = vld [vmem:[%s1] sm:$0xff]
    %v30 = vld [vmem:[%s2] sm:$0x1]
    %v32 = vlaneseq
    %v33 = vshrl.u32 %v32, 7
    %v34 = vsub.s32 0, %v33
    %v35 = vrot.slane %v30, %v34
    %vm37 = vcmask 64512
    %v39 = vsel %vm37, %v21, 0
    %v42 = vsel %vm37, %v22, 0
    %v45 = vsel %vm37, %v23, 0
    %v48 = vsel %vm37, %v24, 0
    %v51 = vsel %vm37, %v25, 0
    %v54 = vsel %vm37, %v26, 0
    %v57 = vsel %vm37, %v27, 0
    %v60 = vsel %vm37, %v28, 0
    %62 = vmatprep.subr.mxu0 0.0
    %63 = vmatpush1.msra.mxu0 0.0
    %64 = vmatprep.subr.mxu0 0.0
    %65 = vmatpush1.msra.mxu0 0.0
    %66 = vmatprep.subr.mxu0 0.0
    %67 = vmatpush1.msra.mxu0 0.0
    %68 = vmatprep.subr.mxu0 0.0
    %69 = vmatpush1.msra.mxu0 0.0
    %70 = vmatprep.subr.mxu0 0.0
    %71 = vmatpush1.msra.mxu0 0.0
    %72 = vmatprep.subr.mxu0 0.0
    %73 = vmatpush1.msra.mxu0 0.0
    %74 = vmatprep.subr.mxu0 0.0
    %75 = vmatpush1.msra.mxu0 0.0
    %76 = vmatprep.subr.mxu0 0.0
    %77 = vmatpush1.msra.mxu0 0.0
    %78 = vmatprep.subr.mxu0 0.0
    %79 = vmatpush1.msra.mxu0 0.0
    %80 = vmatprep.subr.mxu0 0.0
    %81 = vmatpush1.msra.mxu0 0.0
    %82 = vmatprep.subr.mxu0 0.0
    %83 = vmatpush1.msra.mxu0 0.0
    %84 = vmatprep.subr.mxu0 0.0
    %85 = vmatpush1.msra.mxu0 0.0
    %86 = vmatprep.subr.mxu0 0.0
    %87 = vmatpush1.msra.mxu0 0.0
    %88 = vmatprep.subr.mxu0 0.0
    %89 = vmatpush1.msra.mxu0 0.0
    %90 = vmatprep.subr.mxu0 0.0
    %91 = vmatpush1.msra.mxu0 0.0
    %92 = vmatprep.subr.mxu0 0.0
    %93 = vmatpush1.msra.mxu0 %v29
    %94 = vmatprep.subr.mxu0 0.0
    %95 = vmatpush2.msra.mxu0 0.0
    %96 = vmatprep.subr.mxu0 0.0
    %97 = vmatpush2.msra.mxu0 0.0
    %98 = vmatprep.subr.mxu0 0.0
    %99 = vmatpush2.msra.mxu0 0.0
    %100 = vmatprep.subr.mxu0 0.0
    %101 = vmatpush2.msra.mxu0 0.0
    %102 = vmatprep.subr.mxu0 0.0
    %103 = vmatpush2.msra.mxu0 0.0
    %104 = vmatprep.subr.mxu0 0.0
    %105 = vmatpush2.msra.mxu0 0.0
    %106 = vmatprep.subr.mxu0 0.0
    %107 = vmatpush2.msra.mxu0 0.0
    %108 = vmatprep.subr.mxu0 0.0
    %109 = vmatpush2.msra.mxu0 0.0
    %110 = vmatprep.subr.mxu0 0.0
    %111 = vmatpush2.msra.mxu0 0.0
    %112 = vmatprep.subr.mxu0 0.0
    %113 = vmatpush2.msra.mxu0 0.0
    %114 = vmatprep.subr.mxu0 0.0
    %115 = vmatpush2.msra.mxu0 0.0
    %116 = vmatprep.subr.mxu0 0.0
    %117 = vmatpush2.msra.mxu0 0.0
    %118 = vmatprep.subr.mxu0 0.0
    %119 = vmatpush2.msra.mxu0 0.0
    %120 = vmatprep.subr.mxu0 0.0
    %121 = vmatpush2.msra.mxu0 0.0
    %122 = vmatprep.subr.mxu0 0.0
    %123 = vmatpush2.msra.mxu0 0.0
    %124 = vmatprep.subr.mxu0 0.0
    %125 = vmatpush2.msra.mxu0 0.0
    %126 = vmatprep.mubr.f32.mxu0 0.0
    %127 = vmatmul.mubr.f32.gmra.mxu0 %v39
    %v128 = vpop.f32.mrf.mxu0
    %v129 = vadd.f32 %v35, %v128
    %v130 = vpop.f32.mrf.mxu0
    %131 = vmatprep.mubr.f32.mxu0 0.0
    %132 = vmatmul.mubr.f32.gmra.mxu0 %v42
    %v133 = vpop.f32.mrf.mxu0
    %v134 = vadd.f32 %v35, %v133
    %v135 = vpop.f32.mrf.mxu0
    %136 = vmatprep.mubr.f32.mxu0 0.0
    %137 = vmatmul.mubr.f32.gmra.mxu0 %v45
    %v138 = vpop.f32.mrf.mxu0
    %v139 = vadd.f32 %v35, %v138
    %v140 = vpop.f32.mrf.mxu0
    %141 = vmatprep.mubr.f32.mxu0 0.0
    %142 = vmatmul.mubr.f32.gmra.mxu0 %v48
    %v143 = vpop.f32.mrf.mxu0
    %v144 = vadd.f32 %v35, %v143
    %v145 = vpop.f32.mrf.mxu0
    %146 = vmatprep.mubr.f32.mxu0 0.0
    %147 = vmatmul.mubr.f32.gmra.mxu0 %v51
    %v148 = vpop.f32.mrf.mxu0
    %v149 = vadd.f32 %v35, %v148
    %v150 = vpop.f32.mrf.mxu0
    %151 = vmatprep.mubr.f32.mxu0 0.0
    %152 = vmatmul.mubr.f32.gmra.mxu0 %v54
    %v153 = vpop.f32.mrf.mxu0
    %v154 = vadd.f32 %v35, %v153
    %v155 = vpop.f32.mrf.mxu0
    %156 = vmatprep.mubr.f32.mxu0 0.0
    %157 = vmatmul.mubr.f32.gmra.mxu0 %v57
    %v158 = vpop.f32.mrf.mxu0
    %v159 = vadd.f32 %v35, %v158
    %v160 = vpop.f32.mrf.mxu0
    %161 = vmatprep.mubr.f32.mxu0 0.0
    %162 = vmatmul.mubr.f32.gmra.mxu0 %v60
    %v163 = vpop.f32.mrf.mxu0
    %v164 = vadd.f32 %v35, %v163
    %v165 = vpop.f32.mrf.mxu0
    %166 = vdwg.mxu0
    %v167 = vsub.f32 0.0, %v129
    %v168 = vsub.f32 0.0, %v134
    %v169 = vsub.f32 0.0, %v139
    %v170 = vsub.f32 0.0, %v144
    %v171 = vsub.f32 0.0, %v149
    %v172 = vsub.f32 0.0, %v154
    %v173 = vsub.f32 0.0, %v159
    %v174 = vsub.f32 0.0, %v164
    %v175 = vmul.f32 %v167, 1.442695
    %v176 = vpow.pop %v175
    %v177 = vmul.f32 %v168, 1.442695
    %v178 = vpow.pop %v177
    %v179 = vmul.f32 %v169, 1.442695
    %v180 = vpow.pop %v179
    %v181 = vmul.f32 %v170, 1.442695
    %v182 = vpow.pop %v181
    %v183 = vmul.f32 %v171, 1.442695
    %v184 = vpow.pop %v183
    %v185 = vmul.f32 %v172, 1.442695
    %v186 = vpow.pop %v185
    %v187 = vmul.f32 %v173, 1.442695
    %v188 = vpow.pop %v187
    %v189 = vmul.f32 %v174, 1.442695
    %v190 = vpow.pop %v189
    %v191 = vadd.f32 %v176, 1.0
    %v192 = vadd.f32 %v178, 1.0
    %v193 = vadd.f32 %v180, 1.0
    %v194 = vadd.f32 %v182, 1.0
    %v195 = vadd.f32 %v184, 1.0
    %v196 = vadd.f32 %v186, 1.0
    %v197 = vadd.f32 %v188, 1.0
    %v198 = vadd.f32 %v190, 1.0
    %v199 = vrcp.pop %v191
    %v200 = vmul.f32 1.0, %v199
    %v201 = vrcp.pop %v192
    %v202 = vmul.f32 1.0, %v201
    %v203 = vrcp.pop %v193
    %v204 = vmul.f32 1.0, %v203
    %v205 = vrcp.pop %v194
    %v206 = vmul.f32 1.0, %v205
    %v207 = vrcp.pop %v195
    %v208 = vmul.f32 1.0, %v207
    %v209 = vrcp.pop %v196
    %v210 = vmul.f32 1.0, %v209
    %v211 = vrcp.pop %v197
    %v212 = vmul.f32 1.0, %v211
    %v213 = vrcp.pop %v198
    %v214 = vmul.f32 1.0, %v213
    %v215 = vld [vmem:[%s3] sm:$0xff]
    %v216 = vld [vmem:[%s3 + $0x8] sm:$0xff]
    %v217 = vld [vmem:[%s3 + $0x38] sm:$0xff]
    %v218 = vld [vmem:[%s3 + $0x40] sm:$0xff]
    %v219 = vld [vmem:[%s3 + $0x70] sm:$0xff]
    %v220 = vld [vmem:[%s3 + $0x78] sm:$0xff]
    %v221 = vld [vmem:[%s3 + $0xa8] sm:$0xff]
    %v222 = vld [vmem:[%s3 + $0xb0] sm:$0xff]
    %v223 = vld [vmem:[%s3 + $0xe0] sm:$0xff]
    %v224 = vld [vmem:[%s3 + $0xe8] sm:$0xff]
    %v225 = vld [vmem:[%s3 + $0x118] sm:$0xff]
    %v226 = vld [vmem:[%s3 + $0x120] sm:$0xff]
    %v227 = vld [vmem:[%s3 + $0x150] sm:$0xff]
    %v228 = vld [vmem:[%s3 + $0x158] sm:$0xff]
    %v229 = vld [vmem:[%s3 + $0x188] sm:$0xff]
    %v230 = vld [vmem:[%s3 + $0x190] sm:$0xff]
    %v231 = vld [vmem:[%s3 + $0x1c0] sm:$0xff]
    %v232 = vld [vmem:[%s3 + $0x1c8] sm:$0xff]
    %v233 = vld [vmem:[%s3 + $0x1f8] sm:$0xff]
    %v234 = vld [vmem:[%s3 + $0x200] sm:$0xff]
    %v235 = vld [vmem:[%s3 + $0x230] sm:$0xff]
    %v236 = vld [vmem:[%s3 + $0x238] sm:$0xff]
    %v237 = vld [vmem:[%s3 + $0x268] sm:$0xff]
    %v238 = vld [vmem:[%s3 + $0x270] sm:$0xff]
    %v239 = vld [vmem:[%s3 + $0x2a0] sm:$0xff]
    %v240 = vld [vmem:[%s3 + $0x2a8] sm:$0xff]
    %v241 = vld [vmem:[%s3 + $0x2d8] sm:$0xff]
    %v242 = vld [vmem:[%s3 + $0x2e0] sm:$0xff]
    %v243 = vld [vmem:[%s3 + $0x310] sm:$0xff]
    %v244 = vld [vmem:[%s3 + $0x318] sm:$0xff]
    %v245 = vld [vmem:[%s3 + $0x348] sm:$0xff]
    %v246 = vld [vmem:[%s3 + $0x350] sm:$0xff]
    %v247 = vld [vmem:[%s4] sm:$0x3]
    %v249 = vlaneseq
    %v250 = vshrl.u32 %v249, 7
    %v251 = vsub.s32 0, %v250
    %v252 = vrot.slane %v247, %v251
    %v253 = vlaneseq
    %v254 = vshrl.u32 %v253, 7
    %v255 = vsub.s32 1, %v254
    %v256 = vrot.slane %v247, %v255
    %259 = vmatprep.subr.mxu0 %v246
    %260 = vmatpush1.msra.mxu0 %v245
    %261 = vmatprep.subr.mxu0 %v244
    %262 = vmatpush1.msra.mxu0 %v243
    %263 = vmatprep.subr.mxu0 %v242
    %264 = vmatpush1.msra.mxu0 %v241
    %265 = vmatprep.subr.mxu0 %v240
    %266 = vmatpush1.msra.mxu0 %v239
    %267 = vmatprep.subr.mxu0 %v238
    %268 = vmatpush1.msra.mxu0 %v237
    %269 = vmatprep.subr.mxu0 %v236
    %270 = vmatpush1.msra.mxu0 %v235
    %271 = vmatprep.subr.mxu0 %v234
    %272 = vmatpush1.msra.mxu0 %v233
    %273 = vmatprep.subr.mxu0 %v232
    %274 = vmatpush1.msra.mxu0 %v231
    %275 = vmatprep.subr.mxu0 %v230
    %276 = vmatpush1.msra.mxu0 %v229
    %277 = vmatprep.subr.mxu0 %v228
    %278 = vmatpush1.msra.mxu0 %v227
    %279 = vmatprep.subr.mxu0 %v226
    %280 = vmatpush1.msra.mxu0 %v225
    %281 = vmatprep.subr.mxu0 %v224
    %282 = vmatpush1.msra.mxu0 %v223
    %283 = vmatprep.subr.mxu0 %v222
    %284 = vmatpush1.msra.mxu0 %v221
    %285 = vmatprep.subr.mxu0 %v220
    %286 = vmatpush1.msra.mxu0 %v219
    %287 = vmatprep.subr.mxu0 %v218
    %288 = vmatpush1.msra.mxu0 %v217
    %289 = vmatprep.subr.mxu0 %v216
    %290 = vmatpush1.msra.mxu0 %v215
    %291 = vmatprep.subr.mxu0 0.0
    %292 = vmatpush2.msra.mxu0 0.0
    %293 = vmatprep.subr.mxu0 0.0
    %294 = vmatpush2.msra.mxu0 0.0
    %295 = vmatprep.subr.mxu0 0.0
    %296 = vmatpush2.msra.mxu0 0.0
    %297 = vmatprep.subr.mxu0 0.0
    %298 = vmatpush2.msra.mxu0 0.0
    %299 = vmatprep.subr.mxu0 0.0
    %300 = vmatpush2.msra.mxu0 0.0
    %301 = vmatprep.subr.mxu0 0.0
    %302 = vmatpush2.msra.mxu0 0.0
    %303 = vmatprep.subr.mxu0 0.0
    %304 = vmatpush2.msra.mxu0 0.0
    %305 = vmatprep.subr.mxu0 0.0
    %306 = vmatpush2.msra.mxu0 0.0
    %307 = vmatprep.subr.mxu0 0.0
    %308 = vmatpush2.msra.mxu0 0.0
    %309 = vmatprep.subr.mxu0 0.0
    %310 = vmatpush2.msra.mxu0 0.0
    %311 = vmatprep.subr.mxu0 0.0
    %312 = vmatpush2.msra.mxu0 0.0
    %313 = vmatprep.subr.mxu0 0.0
    %314 = vmatpush2.msra.mxu0 0.0
    %315 = vmatprep.subr.mxu0 0.0
    %316 = vmatpush2.msra.mxu0 0.0
    %317 = vmatprep.subr.mxu0 0.0
    %318 = vmatpush2.msra.mxu0 0.0
    %319 = vmatprep.subr.mxu0 0.0
    %320 = vmatpush2.msra.mxu0 0.0
    %321 = vmatprep.subr.mxu0 0.0
    %322 = vmatpush2.msra.mxu0 0.0
    %323 = vmatprep.mubr.f32.mxu0 0.0
    %324 = vmatmul.mubr.f32.gmra.mxu0 %v200
    %v325 = vpop.f32.mrf.mxu0
    %v326 = vadd.f32 %v252, %v325
    %v327 = vpop.f32.mrf.mxu0
    %v328 = vadd.f32 %v256, %v327
    %329 = vmatprep.mubr.f32.mxu0 0.0
    %330 = vmatmul.mubr.f32.gmra.mxu0 %v202
    %v331 = vpop.f32.mrf.mxu0
    %v332 = vadd.f32 %v252, %v331
    %v333 = vpop.f32.mrf.mxu0
    %v334 = vadd.f32 %v256, %v333
    %335 = vmatprep.mubr.f32.mxu0 0.0
    %336 = vmatmul.mubr.f32.gmra.mxu0 %v204
    %v337 = vpop.f32.mrf.mxu0
    %v338 = vadd.f32 %v252, %v337
    %v339 = vpop.f32.mrf.mxu0
    %v340 = vadd.f32 %v256, %v339
    %341 = vmatprep.mubr.f32.mxu0 0.0
    %342 = vmatmul.mubr.f32.gmra.mxu0 %v206
    %v343 = vpop.f32.mrf.mxu0
    %v344 = vadd.f32 %v252, %v343
    %v345 = vpop.f32.mrf.mxu0
    %v346 = vadd.f32 %v256, %v345
    %347 = vmatprep.mubr.f32.mxu0 0.0
    %348 = vmatmul.mubr.f32.gmra.mxu0 %v208
    %v349 = vpop.f32.mrf.mxu0
    %v350 = vadd.f32 %v252, %v349
    %v351 = vpop.f32.mrf.mxu0
    %v352 = vadd.f32 %v256, %v351
    %353 = vmatprep.mubr.f32.mxu0 0.0
    %354 = vmatmul.mubr.f32.gmra.mxu0 %v210
    %v355 = vpop.f32.mrf.mxu0
    %v356 = vadd.f32 %v252, %v355
    %v357 = vpop.f32.mrf.mxu0
    %v358 = vadd.f32 %v256, %v357
    %359 = vmatprep.mubr.f32.mxu0 0.0
    %360 = vmatmul.mubr.f32.gmra.mxu0 %v212
    %v361 = vpop.f32.mrf.mxu0
    %v362 = vadd.f32 %v252, %v361
    %v363 = vpop.f32.mrf.mxu0
    %v364 = vadd.f32 %v256, %v363
    %365 = vmatprep.mubr.f32.mxu0 0.0
    %366 = vmatmul.mubr.f32.gmra.mxu0 %v214
    %v367 = vpop.f32.mrf.mxu0
    %v368 = vadd.f32 %v252, %v367
    %v369 = vpop.f32.mrf.mxu0
    %v370 = vadd.f32 %v256, %v369
    %371 = vdwg.mxu0
    %372 = vst [vmem:[#allocation2] sm:$0xff] %v326
    %373 = vst [vmem:[#allocation2 + $0x8] sm:$0xff] %v328
    %374 = vst [vmem:[#allocation2 + $0x38] sm:$0xff] %v332
    %375 = vst [vmem:[#allocation2 + $0x40] sm:$0xff] %v334
    %376 = vst [vmem:[#allocation2 + $0x70] sm:$0xff] %v338
    %377 = vst [vmem:[#allocation2 + $0x78] sm:$0xff] %v340
    %378 = vst [vmem:[#allocation2 + $0xa8] sm:$0xff] %v344
    %379 = vst [vmem:[#allocation2 + $0xb0] sm:$0xff] %v346
    %380 = vst [vmem:[#allocation2 + $0xe0] sm:$0xff] %v350
    %381 = vst [vmem:[#allocation2 + $0xe8] sm:$0xff] %v352
    %382 = vst [vmem:[#allocation2 + $0x118] sm:$0xff] %v356
    %383 = vst [vmem:[#allocation2 + $0x120] sm:$0xff] %v358
    %384 = vst [vmem:[#allocation2 + $0x150] sm:$0xff] %v362
    %385 = vst [vmem:[#allocation2 + $0x158] sm:$0xff] %v364
    %386 = vst [vmem:[#allocation2 + $0x188] sm:$0xff] %v368
    %387 = vst [vmem:[#allocation2 + $0x190] sm:$0xff] %v370
    %v388 = vld [vmem:[%s3 + $0x10] sm:$0xff]
    %v389 = vld [vmem:[%s3 + $0x18] sm:$0xff]
    %v390 = vld [vmem:[%s3 + $0x48] sm:$0xff]
    %v391 = vld [vmem:[%s3 + $0x50] sm:$0xff]
    %v392 = vld [vmem:[%s3 + $0x80] sm:$0xff]
    %v393 = vld [vmem:[%s3 + $0x88] sm:$0xff]
    %v394 = vld [vmem:[%s3 + $0xb8] sm:$0xff]
    %v395 = vld [vmem:[%s3 + $0xc0] sm:$0xff]
    %v396 = vld [vmem:[%s3 + $0xf0] sm:$0xff]
    %v397 = vld [vmem:[%s3 + $0xf8] sm:$0xff]
    %v398 = vld [vmem:[%s3 + $0x128] sm:$0xff]
    %v399 = vld [vmem:[%s3 + $0x130] sm:$0xff]
    %v400 = vld [vmem:[%s3 + $0x160] sm:$0xff]
    %v401 = vld [vmem:[%s3 + $0x168] sm:$0xff]
    %v402 = vld [vmem:[%s3 + $0x198] sm:$0xff]
    %v403 = vld [vmem:[%s3 + $0x1a0] sm:$0xff]
    %v404 = vld [vmem:[%s3 + $0x1d0] sm:$0xff]
    %v405 = vld [vmem:[%s3 + $0x1d8] sm:$0xff]
    %v406 = vld [vmem:[%s3 + $0x208] sm:$0xff]
    %v407 = vld [vmem:[%s3 + $0x210] sm:$0xff]
    %v408 = vld [vmem:[%s3 + $0x240] sm:$0xff]
    %v409 = vld [vmem:[%s3 + $0x248] sm:$0xff]
    %v410 = vld [vmem:[%s3 + $0x278] sm:$0xff]
    %v411 = vld [vmem:[%s3 + $0x280] sm:$0xff]
    %v412 = vld [vmem:[%s3 + $0x2b0] sm:$0xff]
    %v413 = vld [vmem:[%s3 + $0x2b8] sm:$0xff]
    %v414 = vld [vmem:[%s3 + $0x2e8] sm:$0xff]
    %v415 = vld [vmem:[%s3 + $0x2f0] sm:$0xff]
    %v416 = vld [vmem:[%s3 + $0x320] sm:$0xff]
    %v417 = vld [vmem:[%s3 + $0x328] sm:$0xff]
    %v418 = vld [vmem:[%s3 + $0x358] sm:$0xff]
    %v419 = vld [vmem:[%s3 + $0x360] sm:$0xff]
    %v420 = vld [vmem:[%s4 + $0x2] sm:$0x3]
    %v422 = vlaneseq
    %v423 = vshrl.u32 %v422, 7
    %v424 = vsub.s32 0, %v423
    %v425 = vrot.slane %v420, %v424
    %v426 = vlaneseq
    %v427 = vshrl.u32 %v426, 7
    %v428 = vsub.s32 1, %v427
    %v429 = vrot.slane %v420, %v428
    %432 = vmatprep.subr.mxu0 %v419
    %433 = vmatpush1.msra.mxu0 %v418
    %434 = vmatprep.subr.mxu0 %v417
    %435 = vmatpush1.msra.mxu0 %v416
    %436 = vmatprep.subr.mxu0 %v415
    %437 = vmatpush1.msra.mxu0 %v414
    %438 = vmatprep.subr.mxu0 %v413
    %439 = vmatpush1.msra.mxu0 %v412
    %440 = vmatprep.subr.mxu0 %v411
    %441 = vmatpush1.msra.mxu0 %v410
    %442 = vmatprep.subr.mxu0 %v409
    %443 = vmatpush1.msra.mxu0 %v408
    %444 = vmatprep.subr.mxu0 %v407
    %445 = vmatpush1.msra.mxu0 %v406
    %446 = vmatprep.subr.mxu0 %v405
    %447 = vmatpush1.msra.mxu0 %v404
    %448 = vmatprep.subr.mxu0 %v403
    %449 = vmatpush1.msra.mxu0 %v402
    %450 = vmatprep.subr.mxu0 %v401
    %451 = vmatpush1.msra.mxu0 %v400
    %452 = vmatprep.subr.mxu0 %v399
    %453 = vmatpush1.msra.mxu0 %v398
    %454 = vmatprep.subr.mxu0 %v397
    %455 = vmatpush1.msra.mxu0 %v396
    %456 = vmatprep.subr.mxu0 %v395
    %457 = vmatpush1.msra.mxu0 %v394
    %458 = vmatprep.subr.mxu0 %v393
    %459 = vmatpush1.msra.mxu0 %v392
    %460 = vmatprep.subr.mxu0 %v391
    %461 = vmatpush1.msra.mxu0 %v390
    %462 = vmatprep.subr.mxu0 %v389
    %463 = vmatpush1.msra.mxu0 %v388
    %464 = vmatprep.subr.mxu0 0.0
    %465 = vmatpush2.msra.mxu0 0.0
    %466 = vmatprep.subr.mxu0 0.0
    %467 = vmatpush2.msra.mxu0 0.0
    %468 = vmatprep.subr.mxu0 0.0
    %469 = vmatpush2.msra.mxu0 0.0
    %470 = vmatprep.subr.mxu0 0.0
    %471 = vmatpush2.msra.mxu0 0.0
    %472 = vmatprep.subr.mxu0 0.0
    %473 = vmatpush2.msra.mxu0 0.0
    %474 = vmatprep.subr.mxu0 0.0
    %475 = vmatpush2.msra.mxu0 0.0
    %476 = vmatprep.subr.mxu0 0.0
    %477 = vmatpush2.msra.mxu0 0.0
    %478 = vmatprep.subr.mxu0 0.0
    %479 = vmatpush2.msra.mxu0 0.0
    %480 = vmatprep.subr.mxu0 0.0
    %481 = vmatpush2.msra.mxu0 0.0
    %482 = vmatprep.subr.mxu0 0.0
    %483 = vmatpush2.msra.mxu0 0.0
    %484 = vmatprep.subr.mxu0 0.0
    %485 = vmatpush2.msra.mxu0 0.0
    %486 = vmatprep.subr.mxu0 0.0
    %487 = vmatpush2.msra.mxu0 0.0
    %488 = vmatprep.subr.mxu0 0.0
    %489 = vmatpush2.msra.mxu0 0.0
    %490 = vmatprep.subr.mxu0 0.0
    %491 = vmatpush2.msra.mxu0 0.0
    %492 = vmatprep.subr.mxu0 0.0
    %493 = vmatpush2.msra.mxu0 0.0
    %494 = vmatprep.subr.mxu0 0.0
    %495 = vmatpush2.msra.mxu0 0.0
    %496 = vmatprep.mubr.f32.mxu0 0.0
    %497 = vmatmul.mubr.f32.gmra.mxu0 %v200
    %v498 = vpop.f32.mrf.mxu0
    %v499 = vadd.f32 %v425, %v498
    %v500 = vpop.f32.mrf.mxu0
    %v501 = vadd.f32 %v429, %v500
    %502 = vmatprep.mubr.f32.mxu0 0.0
    %503 = vmatmul.mubr.f32.gmra.mxu0 %v202
    %v504 = vpop.f32.mrf.mxu0
    %v505 = vadd.f32 %v425, %v504
    %v506 = vpop.f32.mrf.mxu0
    %v507 = vadd.f32 %v429, %v506
    %508 = vmatprep.mubr.f32.mxu0 0.0
    %509 = vmatmul.mubr.f32.gmra.mxu0 %v204
    %v510 = vpop.f32.mrf.mxu0
    %v511 = vadd.f32 %v425, %v510
    %v512 = vpop.f32.mrf.mxu0
    %v513 = vadd.f32 %v429, %v512
    %514 = vmatprep.mubr.f32.mxu0 0.0
    %515 = vmatmul.mubr.f32.gmra.mxu0 %v206
    %v516 = vpop.f32.mrf.mxu0
    %v517 = vadd.f32 %v425, %v516
    %v518 = vpop.f32.mrf.mxu0
    %v519 = vadd.f32 %v429, %v518
    %520 = vmatprep.mubr.f32.mxu0 0.0
    %521 = vmatmul.mubr.f32.gmra.mxu0 %v208
    %v522 = vpop.f32.mrf.mxu0
    %v523 = vadd.f32 %v425, %v522
    %v524 = vpop.f32.mrf.mxu0
    %v525 = vadd.f32 %v429, %v524
    %526 = vmatprep.mubr.f32.mxu0 0.0
    %527 = vmatmul.mubr.f32.gmra.mxu0 %v210
    %v528 = vpop.f32.mrf.mxu0
    %v529 = vadd.f32 %v425, %v528
    %v530 = vpop.f32.mrf.mxu0
    %v531 = vadd.f32 %v429, %v530
    %532 = vmatprep.mubr.f32.mxu0 0.0
    %533 = vmatmul.mubr.f32.gmra.mxu0 %v212
    %v534 = vpop.f32.mrf.mxu0
    %v535 = vadd.f32 %v425, %v534
    %v536 = vpop.f32.mrf.mxu0
    %v537 = vadd.f32 %v429, %v536
    %538 = vmatprep.mubr.f32.mxu0 0.0
    %539 = vmatmul.mubr.f32.gmra.mxu0 %v214
    %v540 = vpop.f32.mrf.mxu0
    %v541 = vadd.f32 %v425, %v540
    %v542 = vpop.f32.mrf.mxu0
    %v543 = vadd.f32 %v429, %v542
    %544 = vdwg.mxu0
    %545 = vst [vmem:[#allocation2 + $0x10] sm:$0xff] %v499
    %546 = vst [vmem:[#allocation2 + $0x18] sm:$0xff] %v501
    %547 = vst [vmem:[#allocation2 + $0x48] sm:$0xff] %v505
    %548 = vst [vmem:[#allocation2 + $0x50] sm:$0xff] %v507
    %549 = vst [vmem:[#allocation2 + $0x80] sm:$0xff] %v511
    %550 = vst [vmem:[#allocation2 + $0x88] sm:$0xff] %v513
    %551 = vst [vmem:[#allocation2 + $0xb8] sm:$0xff] %v517
    %552 = vst [vmem:[#allocation2 + $0xc0] sm:$0xff] %v519
    %553 = vst [vmem:[#allocation2 + $0xf0] sm:$0xff] %v523
    %554 = vst [vmem:[#allocation2 + $0xf8] sm:$0xff] %v525
    %555 = vst [vmem:[#allocation2 + $0x128] sm:$0xff] %v529
    %556 = vst [vmem:[#allocation2 + $0x130] sm:$0xff] %v531
    %557 = vst [vmem:[#allocation2 + $0x160] sm:$0xff] %v535
    %558 = vst [vmem:[#allocation2 + $0x168] sm:$0xff] %v537
    %559 = vst [vmem:[#allocation2 + $0x198] sm:$0xff] %v541
    %560 = vst [vmem:[#allocation2 + $0x1a0] sm:$0xff] %v543
    %v561 = vld [vmem:[%s3 + $0x20] sm:$0xff]
    %v562 = vld [vmem:[%s3 + $0x28] sm:$0xff]
    %v563 = vld [vmem:[%s3 + $0x58] sm:$0xff]
    %v564 = vld [vmem:[%s3 + $0x60] sm:$0xff]
    %v565 = vld [vmem:[%s3 + $0x90] sm:$0xff]
    %v566 = vld [vmem:[%s3 + $0x98] sm:$0xff]
    %v567 = vld [vmem:[%s3 + $0xc8] sm:$0xff]
    %v568 = vld [vmem:[%s3 + $0xd0] sm:$0xff]
    %v569 = vld [vmem:[%s3 + $0x100] sm:$0xff]
    %v570 = vld [vmem:[%s3 + $0x108] sm:$0xff]
    %v571 = vld [vmem:[%s3 + $0x138] sm:$0xff]
    %v572 = vld [vmem:[%s3 + $0x140] sm:$0xff]
    %v573 = vld [vmem:[%s3 + $0x170] sm:$0xff]
    %v574 = vld [vmem:[%s3 + $0x178] sm:$0xff]
    %v575 = vld [vmem:[%s3 + $0x1a8] sm:$0xff]
    %v576 = vld [vmem:[%s3 + $0x1b0] sm:$0xff]
    %v577 = vld [vmem:[%s3 + $0x1e0] sm:$0xff]
    %v578 = vld [vmem:[%s3 + $0x1e8] sm:$0xff]
    %v579 = vld [vmem:[%s3 + $0x218] sm:$0xff]
    %v580 = vld [vmem:[%s3 + $0x220] sm:$0xff]
    %v581 = vld [vmem:[%s3 + $0x250] sm:$0xff]
    %v582 = vld [vmem:[%s3 + $0x258] sm:$0xff]
    %v583 = vld [vmem:[%s3 + $0x288] sm:$0xff]
    %v584 = vld [vmem:[%s3 + $0x290] sm:$0xff]
    %v585 = vld [vmem:[%s3 + $0x2c0] sm:$0xff]
    %v586 = vld [vmem:[%s3 + $0x2c8] sm:$0xff]
    %v587 = vld [vmem:[%s3 + $0x2f8] sm:$0xff]
    %v588 = vld [vmem:[%s3 + $0x300] sm:$0xff]
    %v589 = vld [vmem:[%s3 + $0x330] sm:$0xff]
    %v590 = vld [vmem:[%s3 + $0x338] sm:$0xff]
    %v591 = vld [vmem:[%s3 + $0x368] sm:$0xff]
    %v592 = vld [vmem:[%s3 + $0x370] sm:$0xff]
    %v593 = vld [vmem:[%s4 + $0x4] sm:$0x3]
    %v595 = vlaneseq
    %v596 = vshrl.u32 %v595, 7
    %v597 = vsub.s32 0, %v596
    %v598 = vrot.slane %v593, %v597
    %v599 = vlaneseq
    %v600 = vshrl.u32 %v599, 7
    %v601 = vsub.s32 1, %v600
    %v602 = vrot.slane %v593, %v601
    %605 = vmatprep.subr.mxu0 %v592
    %606 = vmatpush1.msra.mxu0 %v591
    %607 = vmatprep.subr.mxu0 %v590
    %608 = vmatpush1.msra.mxu0 %v589
    %609 = vmatprep.subr.mxu0 %v588
    %610 = vmatpush1.msra.mxu0 %v587
    %611 = vmatprep.subr.mxu0 %v586
    %612 = vmatpush1.msra.mxu0 %v585
    %613 = vmatprep.subr.mxu0 %v584
    %614 = vmatpush1.msra.mxu0 %v583
    %615 = vmatprep.subr.mxu0 %v582
    %616 = vmatpush1.msra.mxu0 %v581
    %617 = vmatprep.subr.mxu0 %v580
    %618 = vmatpush1.msra.mxu0 %v579
    %619 = vmatprep.subr.mxu0 %v578
    %620 = vmatpush1.msra.mxu0 %v577
    %621 = vmatprep.subr.mxu0 %v576
    %622 = vmatpush1.msra.mxu0 %v575
    %623 = vmatprep.subr.mxu0 %v574
    %624 = vmatpush1.msra.mxu0 %v573
    %625 = vmatprep.subr.mxu0 %v572
    %626 = vmatpush1.msra.mxu0 %v571
    %627 = vmatprep.subr.mxu0 %v570
    %628 = vmatpush1.msra.mxu0 %v569
    %629 = vmatprep.subr.mxu0 %v568
    %630 = vmatpush1.msra.mxu0 %v567
    %631 = vmatprep.subr.mxu0 %v566
    %632 = vmatpush1.msra.mxu0 %v565
    %633 = vmatprep.subr.mxu0 %v564
    %634 = vmatpush1.msra.mxu0 %v563
    %635 = vmatprep.subr.mxu0 %v562
    %636 = vmatpush1.msra.mxu0 %v561
    %637 = vmatprep.subr.mxu0 0.0
    %638 = vmatpush2.msra.mxu0 0.0
    %639 = vmatprep.subr.mxu0 0.0
    %640 = vmatpush2.msra.mxu0 0.0
    %641 = vmatprep.subr.mxu0 0.0
    %642 = vmatpush2.msra.mxu0 0.0
    %643 = vmatprep.subr.mxu0 0.0
    %644 = vmatpush2.msra.mxu0 0.0
    %645 = vmatprep.subr.mxu0 0.0
    %646 = vmatpush2.msra.mxu0 0.0
    %647 = vmatprep.subr.mxu0 0.0
    %648 = vmatpush2.msra.mxu0 0.0
    %649 = vmatprep.subr.mxu0 0.0
    %650 = vmatpush2.msra.mxu0 0.0
    %651 = vmatprep.subr.mxu0 0.0
    %652 = vmatpush2.msra.mxu0 0.0
    %653 = vmatprep.subr.mxu0 0.0
    %654 = vmatpush2.msra.mxu0 0.0
    %655 = vmatprep.subr.mxu0 0.0
    %656 = vmatpush2.msra.mxu0 0.0
    %657 = vmatprep.subr.mxu0 0.0
    %658 = vmatpush2.msra.mxu0 0.0
    %659 = vmatprep.subr.mxu0 0.0
    %660 = vmatpush2.msra.mxu0 0.0
    %661 = vmatprep.subr.mxu0 0.0
    %662 = vmatpush2.msra.mxu0 0.0
    %663 = vmatprep.subr.mxu0 0.0
    %664 = vmatpush2.msra.mxu0 0.0
    %665 = vmatprep.subr.mxu0 0.0
    %666 = vmatpush2.msra.mxu0 0.0
    %667 = vmatprep.subr.mxu0 0.0
    %668 = vmatpush2.msra.mxu0 0.0
    %669 = vmatprep.mubr.f32.mxu0 0.0
    %670 = vmatmul.mubr.f32.gmra.mxu0 %v200
    %v671 = vpop.f32.mrf.mxu0
    %v672 = vadd.f32 %v598, %v671
    %v673 = vpop.f32.mrf.mxu0
    %v674 = vadd.f32 %v602, %v673
    %675 = vmatprep.mubr.f32.mxu0 0.0
    %676 = vmatmul.mubr.f32.gmra.mxu0 %v202
    %v677 = vpop.f32.mrf.mxu0
    %v678 = vadd.f32 %v598, %v677
    %v679 = vpop.f32.mrf.mxu0
    %v680 = vadd.f32 %v602, %v679
    %681 = vmatprep.mubr.f32.mxu0 0.0
    %682 = vmatmul.mubr.f32.gmra.mxu0 %v204
    %v683 = vpop.f32.mrf.mxu0
    %v684 = vadd.f32 %v598, %v683
    %v685 = vpop.f32.mrf.mxu0
    %v686 = vadd.f32 %v602, %v685
    %687 = vmatprep.mubr.f32.mxu0 0.0
    %688 = vmatmul.mubr.f32.gmra.mxu0 %v206
    %v689 = vpop.f32.mrf.mxu0
    %v690 = vadd.f32 %v598, %v689
    %v691 = vpop.f32.mrf.mxu0
    %v692 = vadd.f32 %v602, %v691
    %693 = vmatprep.mubr.f32.mxu0 0.0
    %694 = vmatmul.mubr.f32.gmra.mxu0 %v208
    %v695 = vpop.f32.mrf.mxu0
    %v696 = vadd.f32 %v598, %v695
    %v697 = vpop.f32.mrf.mxu0
    %v698 = vadd.f32 %v602, %v697
    %699 = vmatprep.mubr.f32.mxu0 0.0
    %700 = vmatmul.mubr.f32.gmra.mxu0 %v210
    %v701 = vpop.f32.mrf.mxu0
    %v702 = vadd.f32 %v598, %v701
    %v703 = vpop.f32.mrf.mxu0
    %v704 = vadd.f32 %v602, %v703
    %705 = vmatprep.mubr.f32.mxu0 0.0
    %706 = vmatmul.mubr.f32.gmra.mxu0 %v212
    %v707 = vpop.f32.mrf.mxu0
    %v708 = vadd.f32 %v598, %v707
    %v709 = vpop.f32.mrf.mxu0
    %v710 = vadd.f32 %v602, %v709
    %711 = vmatprep.mubr.f32.mxu0 0.0
    %712 = vmatmul.mubr.f32.gmra.mxu0 %v214
    %v713 = vpop.f32.mrf.mxu0
    %v714 = vadd.f32 %v598, %v713
    %v715 = vpop.f32.mrf.mxu0
    %v716 = vadd.f32 %v602, %v715
    %717 = vdwg.mxu0
    %718 = vst [vmem:[#allocation2 + $0x20] sm:$0xff] %v672
    %719 = vst [vmem:[#allocation2 + $0x28] sm:$0xff] %v674
    %720 = vst [vmem:[#allocation2 + $0x58] sm:$0xff] %v678
    %721 = vst [vmem:[#allocation2 + $0x60] sm:$0xff] %v680
    %722 = vst [vmem:[#allocation2 + $0x90] sm:$0xff] %v684
    %723 = vst [vmem:[#allocation2 + $0x98] sm:$0xff] %v686
    %724 = vst [vmem:[#allocation2 + $0xc8] sm:$0xff] %v690
    %725 = vst [vmem:[#allocation2 + $0xd0] sm:$0xff] %v692
    %726 = vst [vmem:[#allocation2 + $0x100] sm:$0xff] %v696
    %727 = vst [vmem:[#allocation2 + $0x108] sm:$0xff] %v698
    %728 = vst [vmem:[#allocation2 + $0x138] sm:$0xff] %v702
    %729 = vst [vmem:[#allocation2 + $0x140] sm:$0xff] %v704
    %730 = vst [vmem:[#allocation2 + $0x170] sm:$0xff] %v708
    %731 = vst [vmem:[#allocation2 + $0x178] sm:$0xff] %v710
    %732 = vst [vmem:[#allocation2 + $0x1a8] sm:$0xff] %v714
    %733 = vst [vmem:[#allocation2 + $0x1b0] sm:$0xff] %v716
    %v734 = vld [vmem:[%s3 + $0x30] sm:$0xff]
    %v735 = vld [vmem:[%s3 + $0x68] sm:$0xff]
    %v736 = vld [vmem:[%s3 + $0xa0] sm:$0xff]
    %v737 = vld [vmem:[%s3 + $0xd8] sm:$0xff]
    %v738 = vld [vmem:[%s3 + $0x110] sm:$0xff]
    %v739 = vld [vmem:[%s3 + $0x148] sm:$0xff]
    %v740 = vld [vmem:[%s3 + $0x180] sm:$0xff]
    %v741 = vld [vmem:[%s3 + $0x1b8] sm:$0xff]
    %v742 = vld [vmem:[%s3 + $0x1f0] sm:$0xff]
    %v743 = vld [vmem:[%s3 + $0x228] sm:$0xff]
    %v744 = vld [vmem:[%s3 + $0x260] sm:$0xff]
    %v745 = vld [vmem:[%s3 + $0x298] sm:$0xff]
    %v746 = vld [vmem:[%s3 + $0x2d0] sm:$0xff]
    %v747 = vld [vmem:[%s3 + $0x308] sm:$0xff]
    %v748 = vld [vmem:[%s3 + $0x340] sm:$0xff]
    %v749 = vld [vmem:[%s3 + $0x378] sm:$0xff]
    %v750 = vld [vmem:[%s4 + $0x6] sm:$0x1]
    %v752 = vlaneseq
    %v753 = vshrl.u32 %v752, 7
    %v754 = vsub.s32 0, %v753
    %v755 = vrot.slane %v750, %v754
    %757 = vmatprep.subr.mxu0 0.0
    %758 = vmatpush1.msra.mxu0 %v749
    %759 = vmatprep.subr.mxu0 0.0
    %760 = vmatpush1.msra.mxu0 %v748
    %761 = vmatprep.subr.mxu0 0.0
    %762 = vmatpush1.msra.mxu0 %v747
    %763 = vmatprep.subr.mxu0 0.0
    %764 = vmatpush1.msra.mxu0 %v746
    %765 = vmatprep.subr.mxu0 0.0
    %766 = vmatpush1.msra.mxu0 %v745
    %767 = vmatprep.subr.mxu0 0.0
    %768 = vmatpush1.msra.mxu0 %v744
    %769 = vmatprep.subr.mxu0 0.0
    %770 = vmatpush1.msra.mxu0 %v743
    %771 = vmatprep.subr.mxu0 0.0
    %772 = vmatpush1.msra.mxu0 %v742
    %773 = vmatprep.subr.mxu0 0.0
    %774 = vmatpush1.msra.mxu0 %v741
    %775 = vmatprep.subr.mxu0 0.0
    %776 = vmatpush1.msra.mxu0 %v740
    %777 = vmatprep.subr.mxu0 0.0
    %778 = vmatpush1.msra.mxu0 %v739
    %779 = vmatprep.subr.mxu0 0.0
    %780 = vmatpush1.msra.mxu0 %v738
    %781 = vmatprep.subr.mxu0 0.0
    %782 = vmatpush1.msra.mxu0 %v737
    %783 = vmatprep.subr.mxu0 0.0
    %784 = vmatpush1.msra.mxu0 %v736
    %785 = vmatprep.subr.mxu0 0.0
    %786 = vmatpush1.msra.mxu0 %v735
    %787 = vmatprep.subr.mxu0 0.0
    %788 = vmatpush1.msra.mxu0 %v734
    %789 = vmatprep.subr.mxu0 0.0
    %790 = vmatpush2.msra.mxu0 0.0
    %791 = vmatprep.subr.mxu0 0.0
    %792 = vmatpush2.msra.mxu0 0.0
    %793 = vmatprep.subr.mxu0 0.0
    %794 = vmatpush2.msra.mxu0 0.0
    %795 = vmatprep.subr.mxu0 0.0
    %796 = vmatpush2.msra.mxu0 0.0
    %797 = vmatprep.subr.mxu0 0.0
    %798 = vmatpush2.msra.mxu0 0.0
    %799 = vmatprep.subr.mxu0 0.0
    %800 = vmatpush2.msra.mxu0 0.0
    %801 = vmatprep.subr.mxu0 0.0
    %802 = vmatpush2.msra.mxu0 0.0
    %803 = vmatprep.subr.mxu0 0.0
    %804 = vmatpush2.msra.mxu0 0.0
    %805 = vmatprep.subr.mxu0 0.0
    %806 = vmatpush2.msra.mxu0 0.0
    %807 = vmatprep.subr.mxu0 0.0
    %808 = vmatpush2.msra.mxu0 0.0
    %809 = vmatprep.subr.mxu0 0.0
    %810 = vmatpush2.msra.mxu0 0.0
    %811 = vmatprep.subr.mxu0 0.0
    %812 = vmatpush2.msra.mxu0 0.0
    %813 = vmatprep.subr.mxu0 0.0
    %814 = vmatpush2.msra.mxu0 0.0
    %815 = vmatprep.subr.mxu0 0.0
    %816 = vmatpush2.msra.mxu0 0.0
    %817 = vmatprep.subr.mxu0 0.0
    %818 = vmatpush2.msra.mxu0 0.0
    %819 = vmatprep.subr.mxu0 0.0
    %820 = vmatpush2.msra.mxu0 0.0
    %821 = vmatprep.mubr.f32.mxu0 0.0
    %822 = vmatmul.mubr.f32.gmra.mxu0 %v200
    %v823 = vpop.f32.mrf.mxu0
    %v824 = vadd.f32 %v755, %v823
    %v825 = vpop.f32.mrf.mxu0
    %826 = vmatprep.mubr.f32.mxu0 0.0
    %827 = vmatmul.mubr.f32.gmra.mxu0 %v202
    %v828 = vpop.f32.mrf.mxu0
    %v829 = vadd.f32 %v755, %v828
    %v830 = vpop.f32.mrf.mxu0
    %831 = vmatprep.mubr.f32.mxu0 0.0
    %832 = vmatmul.mubr.f32.gmra.mxu0 %v204
    %v833 = vpop.f32.mrf.mxu0
    %v834 = vadd.f32 %v755, %v833
    %v835 = vpop.f32.mrf.mxu0
    %836 = vmatprep.mubr.f32.mxu0 0.0
    %837 = vmatmul.mubr.f32.gmra.mxu0 %v206
    %v838 = vpop.f32.mrf.mxu0
    %v839 = vadd.f32 %v755, %v838
    %v840 = vpop.f32.mrf.mxu0
    %841 = vmatprep.mubr.f32.mxu0 0.0
    %842 = vmatmul.mubr.f32.gmra.mxu0 %v208
    %v843 = vpop.f32.mrf.mxu0
    %v844 = vadd.f32 %v755, %v843
    %v845 = vpop.f32.mrf.mxu0
    %846 = vmatprep.mubr.f32.mxu0 0.0
    %847 = vmatmul.mubr.f32.gmra.mxu0 %v210
    %v848 = vpop.f32.mrf.mxu0
    %v849 = vadd.f32 %v755, %v848
    %v850 = vpop.f32.mrf.mxu0
    %851 = vmatprep.mubr.f32.mxu0 0.0
    %852 = vmatmul.mubr.f32.gmra.mxu0 %v212
    %v853 = vpop.f32.mrf.mxu0
    %v854 = vadd.f32 %v755, %v853
    %v855 = vpop.f32.mrf.mxu0
    %856 = vmatprep.mubr.f32.mxu0 0.0
    %857 = vmatmul.mubr.f32.gmra.mxu0 %v214
    %v858 = vpop.f32.mrf.mxu0
    %v859 = vadd.f32 %v755, %v858
    %v860 = vpop.f32.mrf.mxu0
    %861 = vdwg.mxu0
    %vm862 = vcmask 130048
    %863 = vst.msk [vmem:[#allocation2 + $0x30] sm:$0xff] %vm862, %v824
    %864 = vst.msk [vmem:[#allocation2 + $0x68] sm:$0xff] %vm862, %v829
    %865 = vst.msk [vmem:[#allocation2 + $0xa0] sm:$0xff] %vm862, %v834
    %866 = vst.msk [vmem:[#allocation2 + $0xd8] sm:$0xff] %vm862, %v839
    %867 = vst.msk [vmem:[#allocation2 + $0x110] sm:$0xff] %vm862, %v844
    %868 = vst.msk [vmem:[#allocation2 + $0x148] sm:$0xff] %vm862, %v849
    %869 = vst.msk [vmem:[#allocation2 + $0x180] sm:$0xff] %vm862, %v854
    %870 = vst.msk [vmem:[#allocation2 + $0x1b8] sm:$0xff] %vm862, %v859
    // Predicated region
    $region22: #{tpu_custom_call.1} parent=1 // pred_check
      _
    $region23: #{tpu_custom_call.1} parent=1 // pred_check_branch
      %872 = sbr.rel (0) target = $region25
    $region24: #{tpu_custom_call.1} parent=1 // pred_region
      %s874 = ssub.s32 7168, 7168
      %875 = vsyncadd [#allocation3], %s874
      %s876 = sshll.u32 [#allocation2], 4
      %s877 = int_to_ptr.vmem [resolvable:$true] %s876
      %882 = dma.vmem_to_hbm [thread:$0]  %s877, 7168, %s5, [#allocation3], 896, 896, 56
    $region25: #{tpu_custom_call.1} parent=1 // pred_fallthru
      _
    // Predicated region
    $region26: #{tpu_custom_call.1} parent=1 // pred_check
      _
    $region27: #{tpu_custom_call.1} parent=1 // pred_check_branch
      %884 = sbr.rel (0) target = $region29
    $region28: #{tpu_custom_call.1} parent=1 // pred_region
      %885 = dma.done [#allocation3], 7168
    $region29: #{tpu_custom_call.1} parent=1 // pred_fallthru
      _
    %886 = vsyncpa [#allocation3], 1

</llo_original>
